<compile_context>
chip_gen: v7x
topology: tpu7x:2x2x1
jax: 0.10.0
libtpu: 0.0.40
codegen_flags: <defaults>
</compile_context>

<pallas_src>
import jax
import jax.numpy as jnp
from jax.experimental import pallas as pl
from jax.experimental.pallas import tpu as pltpu


def _round_up(n, m):
    return ((n + m - 1) // m) * m


def squeeze_last_dim(x):
    if x.ndim == 3 and x.shape[-1] == 1:
        return x[..., 0]
    return x


# ---------------------------------------------------------------------------
# Kernel: fused 4x (Linear + ReLU).  Matmuls on the MXU with f32 accumulation;
# bias add + ReLU stay in f32.
# ---------------------------------------------------------------------------
def _block_kernel(x_ref, w1_ref, w2_ref, w3_ref, w4_ref, b_ref, o_ref):
    cdt = w2_ref.dtype
    # Hoist the four bias rows once (avoids re-issuing sublane-broadcast loads
    # from the (4, U_pad) tile each layer).
    b = b_ref[...]
    b0, b1, b2, b3 = b[0:1, :], b[1:2, :], b[2:3, :], b[3:4, :]

    h = jnp.dot(x_ref[...], w1_ref[...], preferred_element_type=jnp.float32)
    h = jnp.maximum(h + b0, 0.0)

    h = jnp.dot(h.astype(cdt), w2_ref[...], preferred_element_type=jnp.float32)
    h = jnp.maximum(h + b1, 0.0)

    h = jnp.dot(h.astype(cdt), w3_ref[...], preferred_element_type=jnp.float32)
    h = jnp.maximum(h + b2, 0.0)

    h = jnp.dot(h.astype(cdt), w4_ref[...], preferred_element_type=jnp.float32)
    h = jnp.maximum(h + b3, 0.0)

    o_ref[...] = h.astype(o_ref.dtype)


# ---------------------------------------------------------------------------
# One-time parameter preparation (hoisted out of the per-step forward).
# ---------------------------------------------------------------------------
def prepare_block_params(params, *, compute_dtype=jnp.bfloat16):
    """Pad + pack + cast Block parameters once.

    params: dict with w1..w4 stored as (in_features, out_features) and b1..b4
            as (out_features,) (PyTorch nn.Linear state_dict) or (1, out_features).
    Zero padding is mathematically inert through matmul + bias(0) + ReLU, so
    valid outputs are exact w.r.t. the chosen compute dtype.
    """
    compute_dtype = jnp.dtype(compute_dtype)
    w1 = jnp.asarray(params["w1"], jnp.float32)
    w2 = jnp.asarray(params["w2"], jnp.float32)
    w3 = jnp.asarray(params["w3"], jnp.float32)
    w4 = jnp.asarray(params["w4"], jnp.float32)
    L, units = w1.shape

    # Contraction dim padded only to the sublane pack (16 covers bf16 and f32);
    # hidden width padded lane-dense to a multiple of 128.
    L_pad = _round_up(L, 16)
    U_pad = _round_up(units, 128)

    def pad_w(w, rows, cols):
        out = jnp.zeros((rows, cols), jnp.float32)
        out = out.at[: w.shape[0], : w.shape[1]].set(w)
        return out.astype(compute_dtype)

    b_stack = jnp.stack(
        [jnp.asarray(params[k], jnp.float32).reshape(-1)
         for k in ("b1", "b2", "b3", "b4")], axis=0)
    b_packed = jnp.zeros((4, U_pad), jnp.float32).at[:, :units].set(b_stack)

    return dict(
        w1=pad_w(w1, L_pad, U_pad),
        w2=pad_w(w2, U_pad, U_pad),
        w3=pad_w(w3, U_pad, U_pad),
        w4=pad_w(w4, U_pad, U_pad),
        b=b_packed,
        L=int(L), units=int(units), L_pad=int(L_pad), U_pad=int(U_pad),
        compute_dtype=compute_dtype,
    )


# ---------------------------------------------------------------------------
# Forward wrapper.
# ---------------------------------------------------------------------------
def nbeats_block_forward(x, prepared, *, block_batch=512, out_dtype=jnp.float32):
    """Block.forward via one fused Pallas kernel.

    x: (B, backcast_length) or (B, backcast_length, 1), any float dtype.
    prepared: output of prepare_block_params.
    Returns (B, units) in out_dtype (pass bfloat16 when the consumer takes
    bf16 to halve output HBM writeback).
    """
    cdt = prepared["compute_dtype"]
    L, units = prepared["L"], prepared["units"]
    L_pad, U_pad = prepared["L_pad"], prepared["U_pad"]

    x = squeeze_last_dim(x)
    B = x.shape[0]
    assert x.shape == (B, L), x.shape

    # Batch tile: multiple of 8, at most block_batch, capped at ceil(B/2) so
    # the parallel grid has >= 2 steps (both v7x TensorCores active) whenever
    # B >= 16.
    TB = min(int(block_batch), max(8, _round_up(pl.cdiv(B, 2), 8)))
    TB = _round_up(TB, 8)
    B_pad = _round_up(B, TB)

    x_c = x.astype(cdt)
    if (B_pad, L_pad) != (B, L):
        x_c = jnp.zeros((B_pad, L_pad), cdt).at[:B, :L].set(x_c)

    grid = (B_pad // TB,)

    x_spec = pl.BlockSpec((TB, L_pad), lambda i: (i, 0))
    out_spec = pl.BlockSpec((TB, U_pad), lambda i: (i, 0))

    def _weight_specs(single_buffered):
        # Constant index_map -> the operand is DMA'd once; single-buffering it
        # halves its resident VMEM footprint.
        pm = pl.Buffered(1) if single_buffered else None
        w1_spec = pl.BlockSpec((L_pad, U_pad), lambda i: (0, 0), pipeline_mode=pm)
        wu_spec = pl.BlockSpec((U_pad, U_pad), lambda i: (0, 0), pipeline_mode=pm)
        b_spec = pl.BlockSpec((4, U_pad), lambda i: (0, 0), pipeline_mode=pm)
        return [w1_spec, wu_spec, wu_spec, wu_spec, b_spec]

    c_bytes = jnp.dtype(cdt).itemsize
    o_bytes = jnp.dtype(out_dtype).itemsize
    weight_bytes = (L_pad * U_pad + 3 * U_pad * U_pad) * c_bytes + 4 * U_pad * 4
    tile_bytes = 2 * TB * L_pad * c_bytes + 2 * TB * U_pad * o_bytes
    scratch_bytes = 5 * TB * U_pad * 4  # chained f32 intermediates
    # 2x weights covers the (fallback) double-buffered case; clamp to 64 MiB so
    # the limit is valid on v7x (64 MiB physical) as well as v5e/v6e.
    vmem_needed = 2 * weight_bytes + tile_bytes + scratch_bytes + (4 << 20)
    vmem_limit = int(min(max(vmem_needed, 32 << 20), 64 << 20))

    flops = 2 * B_pad * (L_pad * U_pad + 3 * U_pad * U_pad)
    bytes_accessed = (B_pad * L_pad * c_bytes + weight_bytes
                      + B_pad * U_pad * o_bytes)
    cost = pl.CostEstimate(flops=int(flops), transcendentals=0,
                           bytes_accessed=int(bytes_accessed))

    def _call(single_buffered):
        return pl.pallas_call(
            _block_kernel,
            out_shape=jax.ShapeDtypeStruct((B_pad, U_pad), out_dtype),
            grid=grid,
            in_specs=[x_spec] + _weight_specs(single_buffered),
            out_specs=out_spec,
            compiler_params=pltpu.CompilerParams(
                dimension_semantics=("parallel",),
                vmem_limit_bytes=vmem_limit),
            cost_estimate=cost,
        )(x_c, prepared["w1"], prepared["w2"], prepared["w3"], prepared["w4"],
          prepared["b"])

    try:
        out_padded = _call(True)
    except Exception:
        # Some builds only support buffer_count >= 2 for top-level pallas_call
        # operands; fall back to the default pipeline mode (still correct).
        out_padded = _call(False)

    return out_padded[:B, :units]


# ---------------------------------------------------------------------------
# Synthetic init + pure-JAX reference.
# ---------------------------------------------------------------------------
def init_block_params(key, backcast_length, units):
    """Deterministic synthetic parameter init (shapes match nn.Linear layers)."""
    ks = jax.random.split(key, 8)

    def lin(kw, kb, fan_in, fan_out):
        bound = 1.0 / jnp.sqrt(fan_in)
        w = jax.random.uniform(kw, (fan_in, fan_out), jnp.float32, -bound, bound)
        b = jax.random.uniform(kb, (1, fan_out), jnp.float32, -bound, bound)
        return w, b

    w1, b1 = lin(ks[0], ks[1], backcast_length, units)
    w2, b2 = lin(ks[2], ks[3], units, units)
    w3, b3 = lin(ks[4], ks[5], units, units)
    w4, b4 = lin(ks[6], ks[7], units, units)
    # theta_b_fc / theta_f_fc exist in Block.__init__ but are unused in
    # Block.forward, so they are not needed for this forward kernel.
    return dict(w1=w1, b1=b1, w2=w2, b2=b2, w3=w3, b3=b3, w4=w4, b4=b4)


def _reference_forward(x, p, compute_dtype=jnp.bfloat16):
    """Pure-JAX reference mirroring the kernel's compute-dtype numerics."""
    x = squeeze_last_dim(x).astype(jnp.float32)

    def cast(a):
        return a.astype(compute_dtype).astype(jnp.float32)

    def bias(b):
        return jnp.asarray(b, jnp.float32).reshape(1, -1)

    h = jnp.maximum(cast(x) @ cast(p["w1"]) + bias(p["b1"]), 0.0)
    h = jnp.maximum(cast(h) @ cast(p["w2"]) + bias(p["b2"]), 0.0)
    h = jnp.maximum(cast(h) @ cast(p["w3"]) + bias(p["b3"]), 0.0)
    h = jnp.maximum(cast(h) @ cast(p["w4"]) + bias(p["b4"]), 0.0)
    return h


if __name__ == "__main__":
    # Block defaults: backcast_length=10; small units=32 for the test.
    backcast_length = 10
    units = 32

    key = jax.random.PRNGKey(0)
    k_x, k_x2, k_p = jax.random.split(key, 3)
    params = init_block_params(k_p, backcast_length, units)

    # Case 1: (B, L, 1) input (exercises squeeze_last_dim), bf16 compute path.
    batch = 8
    x = jax.random.normal(k_x, (batch, backcast_length, 1), jnp.float32)
    prep_bf16 = prepare_block_params(params, compute_dtype=jnp.bfloat16)
    out = jax.block_until_ready(nbeats_block_forward(x, prep_bf16))
    ref = _reference_forward(x, params, jnp.bfloat16)
    assert out.shape == (batch, units)
    assert jnp.allclose(out, ref, atol=1e-3, rtol=1e-3), (
        float(jnp.max(jnp.abs(out - ref))))

    # Case 2: larger batch (multi-step parallel grid + padded rows/cols),
    # float32 compute path.  Tolerance is loose enough to absorb any
    # MXU-f32-pass vs XLA-default-precision mismatch.
    batch2 = 50
    x2 = jax.random.normal(k_x2, (batch2, backcast_length), jnp.float32)
    prep_f32 = prepare_block_params(params, compute_dtype=jnp.float32)
    out2 = jax.block_until_ready(nbeats_block_forward(x2, prep_f32))
    ref2 = _reference_forward(x2, params, jnp.float32)
    assert out2.shape == (batch2, units)
    assert jnp.allclose(out2, ref2, atol=1e-2, rtol=1e-2), (
        float(jnp.max(jnp.abs(out2 - ref2))))

    print("KERNEL_OK")
</pallas_src>

<mosaic_0001>
module attributes {stable_mosaic.version = 11 : i64} {
  func.func @_block_kernel(%arg0: i32, %arg1: memref<8x16xbf16, #tpu.memory_space<vmem>>, %arg2: memref<16x128xbf16, #tpu.memory_space<vmem>>, %arg3: memref<128x128xbf16, #tpu.memory_space<vmem>>, %arg4: memref<128x128xbf16, #tpu.memory_space<vmem>>, %arg5: memref<128x128xbf16, #tpu.memory_space<vmem>>, %arg6: memref<4x128xf32, #tpu.memory_space<vmem>>, %arg7: memref<8x128xf32, #tpu.memory_space<vmem>>) attributes {dimension_semantics = [#tpu.dimension_semantics<parallel>], iteration_bounds = array<i64: 1>, scalar_prefetch = 0 : i64, scratch_operands = 0 : i64, tpu.core_type = #tpu.core_type<tc>, window_params = [{transform_indices = @transform_0, window_bounds = array<i64: 8, 16>}, {pipeline_mode = #tpu.pipeline_mode<synchronous>, transform_indices = @transform_1, window_bounds = array<i64: 16, 128>}, {pipeline_mode = #tpu.pipeline_mode<synchronous>, transform_indices = @transform_2, window_bounds = array<i64: 128, 128>}, {pipeline_mode = #tpu.pipeline_mode<synchronous>, transform_indices = @transform_3, window_bounds = array<i64: 128, 128>}, {pipeline_mode = #tpu.pipeline_mode<synchronous>, transform_indices = @transform_4, window_bounds = array<i64: 128, 128>}, {pipeline_mode = #tpu.pipeline_mode<synchronous>, transform_indices = @transform_5, window_bounds = array<i64: 4, 128>}, {transform_indices = @transform_6, window_bounds = array<i64: 8, 128>}]} {
    %c0 = arith.constant 0 : index
    %c0_0 = arith.constant 0 : index
    %0 = vector.load %arg6[%c0, %c0_0] : memref<4x128xf32, #tpu.memory_space<vmem>>, vector<4x128xf32>
    %1 = vector.extract_strided_slice %0 {offsets = [0, 0], sizes = [1, 128], strides = [1, 1]} : vector<4x128xf32> to vector<1x128xf32>
    %2 = vector.extract_strided_slice %0 {offsets = [1, 0], sizes = [1, 128], strides = [1, 1]} : vector<4x128xf32> to vector<1x128xf32>
    %3 = vector.extract_strided_slice %0 {offsets = [2, 0], sizes = [1, 128], strides = [1, 1]} : vector<4x128xf32> to vector<1x128xf32>
    %4 = vector.extract_strided_slice %0 {offsets = [3, 0], sizes = [1, 128], strides = [1, 1]} : vector<4x128xf32> to vector<1x128xf32>
    %c0_1 = arith.constant 0 : index
    %c0_2 = arith.constant 0 : index
    %5 = vector.load %arg1[%c0_1, %c0_2] : memref<8x16xbf16, #tpu.memory_space<vmem>>, vector<8x16xbf16>
    %c0_3 = arith.constant 0 : index
    %c0_4 = arith.constant 0 : index
    %6 = vector.load %arg2[%c0_3, %c0_4] : memref<16x128xbf16, #tpu.memory_space<vmem>>, vector<16x128xbf16>
    %cst = arith.constant dense<0.000000e+00> : vector<8x128xf32>
    %7 = tpu.matmul %5, %6, %cst {dimension_numbers = #tpu.dot_dimension_numbers<[1], [0], [0], [1], [0, 0, 1, 1], [], []>} : vector<8x16xbf16>, vector<16x128xbf16>, vector<8x128xf32> -> vector<8x128xf32>
    %8 = vector.broadcast %1 : vector<1x128xf32> to vector<8x128xf32>
    %9 = arith.addf %7, %8 : vector<8x128xf32>
    %cst_5 = arith.constant 0.000000e+00 : f32
    %10 = vector.broadcast %cst_5 : f32 to vector<8x128xf32>
    %11 = arith.maximumf %9, %10 : vector<8x128xf32>
    %12 = arith.truncf %11 : vector<8x128xf32> to vector<8x128xbf16>
    %c0_6 = arith.constant 0 : index
    %c0_7 = arith.constant 0 : index
    %13 = vector.load %arg3[%c0_6, %c0_7] : memref<128x128xbf16, #tpu.memory_space<vmem>>, vector<128x128xbf16>
    %cst_8 = arith.constant dense<0.000000e+00> : vector<8x128xf32>
    %14 = tpu.matmul %12, %13, %cst_8 {dimension_numbers = #tpu.dot_dimension_numbers<[1], [0], [0], [1], [0, 0, 1, 1], [], []>} : vector<8x128xbf16>, vector<128x128xbf16>, vector<8x128xf32> -> vector<8x128xf32>
    %15 = vector.broadcast %2 : vector<1x128xf32> to vector<8x128xf32>
    %16 = arith.addf %14, %15 : vector<8x128xf32>
    %cst_9 = arith.constant 0.000000e+00 : f32
    %17 = vector.broadcast %cst_9 : f32 to vector<8x128xf32>
    %18 = arith.maximumf %16, %17 : vector<8x128xf32>
    %19 = arith.truncf %18 : vector<8x128xf32> to vector<8x128xbf16>
    %c0_10 = arith.constant 0 : index
    %c0_11 = arith.constant 0 : index
    %20 = vector.load %arg4[%c0_10, %c0_11] : memref<128x128xbf16, #tpu.memory_space<vmem>>, vector<128x128xbf16>
    %cst_12 = arith.constant dense<0.000000e+00> : vector<8x128xf32>
    %21 = tpu.matmul %19, %20, %cst_12 {dimension_numbers = #tpu.dot_dimension_numbers<[1], [0], [0], [1], [0, 0, 1, 1], [], []>} : vector<8x128xbf16>, vector<128x128xbf16>, vector<8x128xf32> -> vector<8x128xf32>
    %22 = vector.broadcast %3 : vector<1x128xf32> to vector<8x128xf32>
    %23 = arith.addf %21, %22 : vector<8x128xf32>
    %cst_13 = arith.constant 0.000000e+00 : f32
    %24 = vector.broadcast %cst_13 : f32 to vector<8x128xf32>
    %25 = arith.maximumf %23, %24 : vector<8x128xf32>
    %26 = arith.truncf %25 : vector<8x128xf32> to vector<8x128xbf16>
    %c0_14 = arith.constant 0 : index
    %c0_15 = arith.constant 0 : index
    %27 = vector.load %arg5[%c0_14, %c0_15] : memref<128x128xbf16, #tpu.memory_space<vmem>>, vector<128x128xbf16>
    %cst_16 = arith.constant dense<0.000000e+00> : vector<8x128xf32>
    %28 = tpu.matmul %26, %27, %cst_16 {dimension_numbers = #tpu.dot_dimension_numbers<[1], [0], [0], [1], [0, 0, 1, 1], [], []>} : vector<8x128xbf16>, vector<128x128xbf16>, vector<8x128xf32> -> vector<8x128xf32>
    %29 = vector.broadcast %4 : vector<1x128xf32> to vector<8x128xf32>
    %30 = arith.addf %28, %29 : vector<8x128xf32>
    %cst_17 = arith.constant 0.000000e+00 : f32
    %31 = vector.broadcast %cst_17 : f32 to vector<8x128xf32>
    %32 = arith.maximumf %30, %31 : vector<8x128xf32>
    %c0_18 = arith.constant 0 : index
    %c0_19 = arith.constant 0 : index
    %33 = vector.load %arg7[%c0_18, %c0_19] : memref<8x128xf32, #tpu.memory_space<vmem>>, vector<8x128xf32>
    tpu.vector_store %arg7[%c0_18, %c0_19], %32 {strides = array<i32>} : memref<8x128xf32, #tpu.memory_space<vmem>>, vector<8x128xf32>,
    return
  }
  func.func @transform_0(%arg0: i32) -> (i32, i32) {
    %c0_i32 = arith.constant 0 : i32
    %c0_i32_0 = arith.constant 0 : i32
    return %arg0, %c0_i32 : i32, i32
  }
  func.func @transform_1(%arg0: i32) -> (i32, i32) {
    %c0_i32 = arith.constant 0 : i32
    %c0_i32_0 = arith.constant 0 : i32
    %c0_i32_1 = arith.constant 0 : i32
    return %c0_i32, %c0_i32_0 : i32, i32
  }
  func.func @transform_2(%arg0: i32) -> (i32, i32) {
    %c0_i32 = arith.constant 0 : i32
    %c0_i32_0 = arith.constant 0 : i32
    %c0_i32_1 = arith.constant 0 : i32
    return %c0_i32, %c0_i32_0 : i32, i32
  }
  func.func @transform_3(%arg0: i32) -> (i32, i32) {
    %c0_i32 = arith.constant 0 : i32
    %c0_i32_0 = arith.constant 0 : i32
    %c0_i32_1 = arith.constant 0 : i32
    return %c0_i32, %c0_i32_0 : i32, i32
  }
  func.func @transform_4(%arg0: i32) -> (i32, i32) {
    %c0_i32 = arith.constant 0 : i32
    %c0_i32_0 = arith.constant 0 : i32
    %c0_i32_1 = arith.constant 0 : i32
    return %c0_i32, %c0_i32_0 : i32, i32
  }
  func.func @transform_5(%arg0: i32) -> (i32, i32) {
    %c0_i32 = arith.constant 0 : i32
    %c0_i32_0 = arith.constant 0 : i32
    %c0_i32_1 = arith.constant 0 : i32
    return %c0_i32, %c0_i32_0 : i32, i32
  }
  func.func @transform_6(%arg0: i32) -> (i32, i32) {
    %c0_i32 = arith.constant 0 : i32
    %c0_i32_0 = arith.constant 0 : i32
    return %arg0, %c0_i32 : i32, i32
  }
}

module attributes {stable_mosaic.version = 11 : i64} {
  func.func @_block_kernel(%arg0: i32, %arg1: memref<8x16xbf16, #tpu.memory_space<vmem>>, %arg2: memref<16x128xbf16, #tpu.memory_space<vmem>>, %arg3: memref<128x128xbf16, #tpu.memory_space<vmem>>, %arg4: memref<128x128xbf16, #tpu.memory_space<vmem>>, %arg5: memref<128x128xbf16, #tpu.memory_space<vmem>>, %arg6: memref<4x128xf32, #tpu.memory_space<vmem>>, %arg7: memref<8x128xf32, #tpu.memory_space<vmem>>) attributes {dimension_semantics = [#tpu.dimension_semantics<parallel>], iteration_bounds = array<i64: 1>, scalar_prefetch = 0 : i64, scratch_operands = 0 : i64, tpu.core_type = #tpu.core_type<tc>, window_params = [{transform_indices = @transform_0, window_bounds = array<i64: 8, 16>}, {pipeline_mode = #tpu.pipeline_mode<synchronous>, transform_indices = @transform_1, window_bounds = array<i64: 16, 128>}, {pipeline_mode = #tpu.pipeline_mode<synchronous>, transform_indices = @transform_2, window_bounds = array<i64: 128, 128>}, {pipeline_mode = #tpu.pipeline_mode<synchronous>, transform_indices = @transform_3, window_bounds = array<i64: 128, 128>}, {pipeline_mode = #tpu.pipeline_mode<synchronous>, transform_indices = @transform_4, window_bounds = array<i64: 128, 128>}, {pipeline_mode = #tpu.pipeline_mode<synchronous>, transform_indices = @transform_5, window_bounds = array<i64: 4, 128>}, {transform_indices = @transform_6, window_bounds = array<i64: 8, 128>}]} {
    %c0 = arith.constant 0 : index
    %c0_0 = arith.constant 0 : index
    %0 = vector.load %arg6[%c0, %c0_0] : memref<4x128xf32, #tpu.memory_space<vmem>>, vector<4x128xf32>
    %1 = vector.extract_strided_slice %0 {offsets = [0, 0], sizes = [1, 128], strides = [1, 1]} : vector<4x128xf32> to vector<1x128xf32>
    %2 = vector.extract_strided_slice %0 {offsets = [1, 0], sizes = [1, 128], strides = [1, 1]} : vector<4x128xf32> to vector<1x128xf32>
    %3 = vector.extract_strided_slice %0 {offsets = [2, 0], sizes = [1, 128], strides = [1, 1]} : vector<4x128xf32> to vector<1x128xf32>
    %4 = vector.extract_strided_slice %0 {offsets = [3, 0], sizes = [1, 128], strides = [1, 1]} : vector<4x128xf32> to vector<1x128xf32>
    %c0_1 = arith.constant 0 : index
    %c0_2 = arith.constant 0 : index
    %5 = vector.load %arg1[%c0_1, %c0_2] : memref<8x16xbf16, #tpu.memory_space<vmem>>, vector<8x16xbf16>
    %c0_3 = arith.constant 0 : index
    %c0_4 = arith.constant 0 : index
    %6 = vector.load %arg2[%c0_3, %c0_4] : memref<16x128xbf16, #tpu.memory_space<vmem>>, vector<16x128xbf16>
    %cst = arith.constant dense<0.000000e+00> : vector<8x128xf32>
    %7 = tpu.matmul %5, %6, %cst {dimension_numbers = #tpu.dot_dimension_numbers<[1], [0], [0], [1], [0, 0, 1, 1], [], []>} : vector<8x16xbf16>, vector<16x128xbf16>, vector<8x128xf32> -> vector<8x128xf32>
    %8 = vector.broadcast %1 : vector<1x128xf32> to vector<8x128xf32>
    %9 = arith.addf %7, %8 : vector<8x128xf32>
    %cst_5 = arith.constant 0.000000e+00 : f32
    %10 = vector.broadcast %cst_5 : f32 to vector<8x128xf32>
    %11 = arith.maximumf %9, %10 : vector<8x128xf32>
    %12 = arith.truncf %11 : vector<8x128xf32> to vector<8x128xbf16>
    %c0_6 = arith.constant 0 : index
    %c0_7 = arith.constant 0 : index
    %13 = vector.load %arg3[%c0_6, %c0_7] : memref<128x128xbf16, #tpu.memory_space<vmem>>, vector<128x128xbf16>
    %cst_8 = arith.constant dense<0.000000e+00> : vector<8x128xf32>
    %14 = tpu.matmul %12, %13, %cst_8 {dimension_numbers = #tpu.dot_dimension_numbers<[1], [0], [0], [1], [0, 0, 1, 1], [], []>} : vector<8x128xbf16>, vector<128x128xbf16>, vector<8x128xf32> -> vector<8x128xf32>
    %15 = vector.broadcast %2 : vector<1x128xf32> to vector<8x128xf32>
    %16 = arith.addf %14, %15 : vector<8x128xf32>
    %cst_9 = arith.constant 0.000000e+00 : f32
    %17 = vector.broadcast %cst_9 : f32 to vector<8x128xf32>
    %18 = arith.maximumf %16, %17 : vector<8x128xf32>
    %19 = arith.truncf %18 : vector<8x128xf32> to vector<8x128xbf16>
    %c0_10 = arith.constant 0 : index
    %c0_11 = arith.constant 0 : index
    %20 = vector.load %arg4[%c0_10, %c0_11] : memref<128x128xbf16, #tpu.memory_space<vmem>>, vector<128x128xbf16>
    %cst_12 = arith.constant dense<0.000000e+00> : vector<8x128xf32>
    %21 = tpu.matmul %19, %20, %cst_12 {dimension_numbers = #tpu.dot_dimension_numbers<[1], [0], [0], [1], [0, 0, 1, 1], [], []>} : vector<8x128xbf16>, vector<128x128xbf16>, vector<8x128xf32> -> vector<8x128xf32>
    %22 = vector.broadcast %3 : vector<1x128xf32> to vector<8x128xf32>
    %23 = arith.addf %21, %22 : vector<8x128xf32>
    %cst_13 = arith.constant 0.000000e+00 : f32
    %24 = vector.broadcast %cst_13 : f32 to vector<8x128xf32>
    %25 = arith.maximumf %23, %24 : vector<8x128xf32>
    %26 = arith.truncf %25 : vector<8x128xf32> to vector<8x128xbf16>
    %c0_14 = arith.constant 0 : index
    %c0_15 = arith.constant 0 : index
    %27 = vector.load %arg5[%c0_14, %c0_15] : memref<128x128xbf16, #tpu.memory_space<vmem>>, vector<128x128xbf16>
    %cst_16 = arith.constant dense<0.000000e+00> : vector<8x128xf32>
    %28 = tpu.matmul %26, %27, %cst_16 {dimension_numbers = #tpu.dot_dimension_numbers<[1], [0], [0], [1], [0, 0, 1, 1], [], []>} : vector<8x128xbf16>, vector<128x128xbf16>, vector<8x128xf32> -> vector<8x128xf32>
    %29 = vector.broadcast %4 : vector<1x128xf32> to vector<8x128xf32>
    %30 = arith.addf %28, %29 : vector<8x128xf32>
    %cst_17 = arith.constant 0.000000e+00 : f32
    %31 = vector.broadcast %cst_17 : f32 to vector<8x128xf32>
    %32 = arith.maximumf %30, %31 : vector<8x128xf32>
    %c0_18 = arith.constant 0 : index
    %c0_19 = arith.constant 0 : index
    %33 = vector.load %arg7[%c0_18, %c0_19] : memref<8x128xf32, #tpu.memory_space<vmem>>, vector<8x128xf32>
    tpu.vector_store %arg7[%c0_18, %c0_19], %32 {strides = array<i32>} : memref<8x128xf32, #tpu.memory_space<vmem>>, vector<8x128xf32>,
    return
  }
  func.func @transform_0(%arg0: i32) -> (i32, i32) {
    %c0_i32 = arith.constant 0 : i32
    %c0_i32_0 = arith.constant 0 : i32
    return %arg0, %c0_i32 : i32, i32
  }
  func.func @transform_1(%arg0: i32) -> (i32, i32) {
    %c0_i32 = arith.constant 0 : i32
    %c0_i32_0 = arith.constant 0 : i32
    %c0_i32_1 = arith.constant 0 : i32
    return %c0_i32, %c0_i32_0 : i32, i32
  }
  func.func @transform_2(%arg0: i32) -> (i32, i32) {
    %c0_i32 = arith.constant 0 : i32
    %c0_i32_0 = arith.constant 0 : i32
    %c0_i32_1 = arith.constant 0 : i32
    return %c0_i32, %c0_i32_0 : i32, i32
  }
  func.func @transform_3(%arg0: i32) -> (i32, i32) {
    %c0_i32 = arith.constant 0 : i32
    %c0_i32_0 = arith.constant 0 : i32
    %c0_i32_1 = arith.constant 0 : i32
    return %c0_i32, %c0_i32_0 : i32, i32
  }
  func.func @transform_4(%arg0: i32) -> (i32, i32) {
    %c0_i32 = arith.constant 0 : i32
    %c0_i32_0 = arith.constant 0 : i32
    %c0_i32_1 = arith.constant 0 : i32
    return %c0_i32, %c0_i32_0 : i32, i32
  }
  func.func @transform_5(%arg0: i32) -> (i32, i32) {
    %c0_i32 = arith.constant 0 : i32
    %c0_i32_0 = arith.constant 0 : i32
    %c0_i32_1 = arith.constant 0 : i32
    return %c0_i32, %c0_i32_0 : i32, i32
  }
  func.func @transform_6(%arg0: i32) -> (i32, i32) {
    %c0_i32 = arith.constant 0 : i32
    %c0_i32_0 = arith.constant 0 : i32
    return %arg0, %c0_i32 : i32, i32
  }
}

</mosaic_0001>

<llo_original>
// kernel: tpu_custom_call.1
$region0: #{tpu_custom_call.1}
  #allocation0 [shape = 'u32[]', space=smem, size = 0x4, offset = 0x4, fixed_abs, tag = 'smem constant byte address 0x4 - core index']
  #allocation1 [shape = 'u32[144,128]{1,0:T(1,128)}', space=vmem, size = 0x12000, scoped, tag = 'internal scratch']
  %s0 = inlined_call_operand.hbm [shape: bf16[8,16], index: 0, kind: input, shape index: {}]
  %s1 = inlined_call_operand.hbm [shape: bf16[16,128], index: 1, kind: input, shape index: {}]
  %s2 = inlined_call_operand.hbm [shape: bf16[128,128], index: 2, kind: input, shape index: {}]
  %s3 = inlined_call_operand.hbm [shape: bf16[128,128], index: 3, kind: input, shape index: {}]
  %s4 = inlined_call_operand.hbm [shape: bf16[128,128], index: 4, kind: input, shape index: {}]
  %s5 = inlined_call_operand.vmem [shape: f32[4,128], index: 5, kind: input, shape index: {}]
  %s6 = inlined_call_operand.hbm [shape: f32[8,128], index: 6, kind: output, shape index: {}]
  %s7 = sld [smem:[#allocation0]]
  $region54: #{tpu_custom_call.1} parent=0
    _
  %s9 = ssub.s32 1, %s7
  %s10 = scalar_select 0, %s9, %s7
  $region1: #{tpu_custom_call.1} parent=0
    #allocation2 [shape = 'u8[2048]{0}', space=vmem, size = 0x800, scoped, tag = 'input window, operand 0, single buffered']
    #allocation3 [shape = 's32[1]{0}', space=sflag, size = 0x4, scoped, tag = 'scoped memory for tpu_custom_call.1']
    #allocation4 [shape = 's32[1]{0}', space=sflag, size = 0x4, scoped, tag = 'scoped memory for tpu_custom_call.1']
    #allocation5 [shape = 'u8[4096]{0}', space=vmem, size = 0x1000, scoped, tag = 'input window, operand 1, single buffered']
    #allocation6 [shape = 's32[1]{0}', space=sflag, size = 0x4, scoped, tag = 'scoped memory for tpu_custom_call.1']
    #allocation7 [shape = 'u8[32768]{0}', space=vmem, size = 0x8000, scoped, tag = 'input window, operand 2, single buffered']
    #allocation8 [shape = 'u8[32768]{0}', space=vmem, size = 0x8000, scoped, tag = 'input window, operand 3, single buffered']
    #allocation9 [shape = 's32[1]{0}', space=sflag, size = 0x4, scoped, tag = 'scoped memory for tpu_custom_call.1']
    #allocation10 [shape = 'u8[32768]{0}', space=vmem, size = 0x8000, scoped, tag = 'input window, operand 4, single buffered']
    #allocation11 [shape = 'u8[4096]{0}', space=vmem, size = 0x1000, scoped, tag = 'output window, operand 0, single buffered']
    %11 = vsyncpa [#allocation3], 0
    %12 = vsyncpa [#allocation6], 0
    %13 = vsyncpa [#allocation9], 0
    %14 = vsyncpa [#allocation4], 0
    // Predicated region
    $region2: #{tpu_custom_call.1} parent=1 // pred_check
      _
    $region3: #{tpu_custom_call.1} parent=1 // pred_check_branch
      %16 = sbr.rel (0) target = $region5
    $region4: #{tpu_custom_call.1} parent=1 // pred_region
      %s18 = ssub.s32 64, 64
      %19 = vsyncadd [#allocation3], %s18
      %s21 = sshll.u32 [#allocation2], 4
      %s22 = int_to_ptr.vmem [resolvable:$true] %s21
      %24 = dma.hbm_to_vmem [thread:$0]  %s0, 64, %s22, [#allocation3]
    $region5: #{tpu_custom_call.1} parent=1 // pred_fallthru
      _
    // Predicated region
    $region6: #{tpu_custom_call.1} parent=1 // pred_check
      _
    $region7: #{tpu_custom_call.1} parent=1 // pred_check_branch
      %26 = sbr.rel (0) target = $region9
    $region8: #{tpu_custom_call.1} parent=1 // pred_region
      %s28 = ssub.s32 128, 128
      %29 = vsyncadd [#allocation6], %s28
      %s30 = sshll.u32 [#allocation5], 4
      %s31 = int_to_ptr.vmem [resolvable:$true] %s30
      %36 = dma.hbm_to_vmem [thread:$0]  %s1, 128, %s31, [#allocation6], 64, 64, 4
    $region9: #{tpu_custom_call.1} parent=1 // pred_fallthru
      _
    // Predicated region
    $region10: #{tpu_custom_call.1} parent=1 // pred_check
      _
    $region11: #{tpu_custom_call.1} parent=1 // pred_check_branch
      %38 = sbr.rel (0) target = $region13
    $region12: #{tpu_custom_call.1} parent=1 // pred_region
      %s40 = ssub.s32 1024, 1024
      %41 = vsyncadd [#allocation6], %s40
      %s42 = sshll.u32 [#allocation7], 4
      %s43 = int_to_ptr.vmem [resolvable:$true] %s42
      %48 = dma.hbm_to_vmem [thread:$0]  %s2, 1024, %s43, [#allocation6], 64, 64, 4
    $region13: #{tpu_custom_call.1} parent=1 // pred_fallthru
      _
    // Predicated region
    $region14: #{tpu_custom_call.1} parent=1 // pred_check
      _
    $region15: #{tpu_custom_call.1} parent=1 // pred_check_branch
      %50 = sbr.rel (0) target = $region17
    $region16: #{tpu_custom_call.1} parent=1 // pred_region
      %s52 = ssub.s32 1024, 1024
      %53 = vsyncadd [#allocation9], %s52
      %s54 = sshll.u32 [#allocation8], 4
      %s55 = int_to_ptr.vmem [resolvable:$true] %s54
      %60 = dma.hbm_to_vmem [thread:$0]  %s3, 1024, %s55, [#allocation9], 64, 64, 4
    $region17: #{tpu_custom_call.1} parent=1 // pred_fallthru
      _
    // Predicated region
    $region18: #{tpu_custom_call.1} parent=1 // pred_check
      _
    $region19: #{tpu_custom_call.1} parent=1 // pred_check_branch
      %62 = sbr.rel (0) target = $region21
    $region20: #{tpu_custom_call.1} parent=1 // pred_region
      %s64 = ssub.s32 1024, 1024
      %65 = vsyncadd [#allocation9], %s64
      %s66 = sshll.u32 [#allocation10], 4
      %s67 = int_to_ptr.vmem [resolvable:$true] %s66
      %72 = dma.hbm_to_vmem [thread:$0]  %s4, 1024, %s67, [#allocation9], 64, 64, 4
    $region21: #{tpu_custom_call.1} parent=1 // pred_fallthru
      _
    // Predicated region
    $region22: #{tpu_custom_call.1} parent=1 // pred_check
      _
    $region23: #{tpu_custom_call.1} parent=1 // pred_check_branch
      %74 = sbr.rel (0) target = $region25
    $region24: #{tpu_custom_call.1} parent=1 // pred_region
      _
    $region25: #{tpu_custom_call.1} parent=1 // pred_fallthru
      _
    // Predicated region
    $region26: #{tpu_custom_call.1} parent=1 // pred_check
      _
    $region27: #{tpu_custom_call.1} parent=1 // pred_check_branch
      %76 = sbr.rel (0) target = $region29
    $region28: #{tpu_custom_call.1} parent=1 // pred_region
      %77 = dma.done [#allocation3], 64
    $region29: #{tpu_custom_call.1} parent=1 // pred_fallthru
      _
    // Predicated region
    $region30: #{tpu_custom_call.1} parent=1 // pred_check
      _
    $region31: #{tpu_custom_call.1} parent=1 // pred_check_branch
      %79 = sbr.rel (0) target = $region33
    $region32: #{tpu_custom_call.1} parent=1 // pred_region
      %80 = dma.done [#allocation6], 128
    $region33: #{tpu_custom_call.1} parent=1 // pred_fallthru
      _
    // Predicated region
    $region34: #{tpu_custom_call.1} parent=1 // pred_check
      _
    $region35: #{tpu_custom_call.1} parent=1 // pred_check_branch
      %82 = sbr.rel (0) target = $region37
    $region36: #{tpu_custom_call.1} parent=1 // pred_region
      %83 = dma.done [#allocation6], 1024
    $region37: #{tpu_custom_call.1} parent=1 // pred_fallthru
      _
    // Predicated region
    $region38: #{tpu_custom_call.1} parent=1 // pred_check
      _
    $region39: #{tpu_custom_call.1} parent=1 // pred_check_branch
      %85 = sbr.rel (0) target = $region41
    $region40: #{tpu_custom_call.1} parent=1 // pred_region
      %86 = dma.done [#allocation9], 1024
    $region41: #{tpu_custom_call.1} parent=1 // pred_fallthru
      _
    // Predicated region
    $region42: #{tpu_custom_call.1} parent=1 // pred_check
      _
    $region43: #{tpu_custom_call.1} parent=1 // pred_check_branch
      %88 = sbr.rel (0) target = $region45
    $region44: #{tpu_custom_call.1} parent=1 // pred_region
      %89 = dma.done [#allocation9], 1024
    $region45: #{tpu_custom_call.1} parent=1 // pred_fallthru
      _
    %v91 = vld [vmem:[%s5] sm:$0xf]
    %v92 = vld [vmem:[#allocation2] sm:$0xf]
    %v93 = vld [vmem:[#allocation5] sm:$0xf]
    %v94 = vld [vmem:[#allocation5 + $0x4] sm:$0xf]
    %v95 = vlaneseq
    %v96 = vshrl.u32 %v95, 7
    %v97 = vsub.s32 0, %v96
    %v98 = vrot.slane %v91, %v97
    %v101 = vunpack.c.l.b16 %v93
    %v102 = vunpack.c.l.b16 %v94
    %v103 = vpack.c.b16 %v102, %v101
    %vm105 = vcmask 130048
    %v107 = vsel %vm105, %v92, 0
    %109 = vmatprep.subr.bf16.mxu0 0
    %110 = vmatpush1.bf16.msra.mxu0 %v103
    %111 = vmatprep.subr.bf16.mxu0 0
    %112 = vmatpush1.bf16.msra.mxu0 0
    %113 = vmatprep.subr.bf16.mxu0 0
    %114 = vmatpush1.bf16.msra.mxu0 0
    %115 = vmatprep.subr.bf16.mxu0 0
    %116 = vmatpush1.bf16.msra.mxu0 0
    %117 = vmatprep.subr.bf16.mxu0 0
    %118 = vmatpush1.bf16.msra.mxu0 0
    %119 = vmatprep.subr.bf16.mxu0 0
    %120 = vmatpush1.bf16.msra.mxu0 0
    %121 = vmatprep.subr.bf16.mxu0 0
    %122 = vmatpush1.bf16.msra.mxu0 0
    %123 = vmatprep.subr.bf16.mxu0 0
    %124 = vmatpush1.bf16.msra.mxu0 0
    %125 = vmatprep.subr.bf16.mxu0 0
    %126 = vmatpush1.bf16.msra.mxu0 0
    %127 = vmatprep.subr.bf16.mxu0 0
    %128 = vmatpush1.bf16.msra.mxu0 0
    %129 = vmatprep.subr.bf16.mxu0 0
    %130 = vmatpush1.bf16.msra.mxu0 0
    %131 = vmatprep.subr.bf16.mxu0 0
    %132 = vmatpush1.bf16.msra.mxu0 0
    %133 = vmatprep.subr.bf16.mxu0 0
    %134 = vmatpush1.bf16.msra.mxu0 0
    %135 = vmatprep.subr.bf16.mxu0 0
    %136 = vmatpush1.bf16.msra.mxu0 0
    %137 = vmatprep.subr.bf16.mxu0 0
    %138 = vmatpush1.bf16.msra.mxu0 0
    %139 = vmatprep.subr.bf16.mxu0 0
    %140 = vmatpush1.bf16.msra.mxu0 0
    %141 = vmatprep.mubr.bf16.mxu0 0
    %142 = vmatmul.mubr.bf16.gmra.mrb[0].mxu0 %v107
    %v143 = vpop.f32.mrb[0].mxu0
    %v144 = vadd.f32 %v98, %v143
    %v145 = vpop.f32.mrb[0].mxu0
    %v146 = vpop.f32.mrb[0].mxu0
    %v147 = vpop.f32.mrb[0].mxu0
    %148 = vdwg.mxu0
    %v149 = vmax.f32 %v144, 0.0
    %v150 = vpack.c.bf16 %v149, %v149
    %v151 = vld [vmem:[#allocation7] sm:$0xf]
    %v152 = vld [vmem:[#allocation7 + $0x4] sm:$0xf]
    %v153 = vld [vmem:[#allocation7 + $0x8] sm:$0xf]
    %v154 = vld [vmem:[#allocation7 + $0xc] sm:$0xf]
    %v155 = vld [vmem:[#allocation7 + $0x10] sm:$0xf]
    %v156 = vld [vmem:[#allocation7 + $0x14] sm:$0xf]
    %v157 = vld [vmem:[#allocation7 + $0x18] sm:$0xf]
    %v158 = vld [vmem:[#allocation7 + $0x1c] sm:$0xf]
    %v159 = vld [vmem:[#allocation7 + $0x20] sm:$0xf]
    %v160 = vld [vmem:[#allocation7 + $0x24] sm:$0xf]
    %v161 = vld [vmem:[#allocation7 + $0x28] sm:$0xf]
    %v162 = vld [vmem:[#allocation7 + $0x2c] sm:$0xf]
    %v163 = vld [vmem:[#allocation7 + $0x30] sm:$0xf]
    %v164 = vld [vmem:[#allocation7 + $0x34] sm:$0xf]
    %v165 = vld [vmem:[#allocation7 + $0x38] sm:$0xf]
    %v166 = vld [vmem:[#allocation7 + $0x3c] sm:$0xf]
    %v167 = vlaneseq
    %v168 = vshrl.u32 %v167, 7
    %v169 = vsub.s32 1, %v168
    %v170 = vrot.slane %v91, %v169
    %v187 = vunpack.c.l.b16 %v151
    %v188 = vunpack.c.l.b16 %v152
    %v189 = vunpack.c.l.b16 %v153
    %v190 = vunpack.c.l.b16 %v154
    %v191 = vunpack.c.l.b16 %v155
    %v192 = vunpack.c.l.b16 %v156
    %v193 = vunpack.c.l.b16 %v157
    %v194 = vunpack.c.l.b16 %v158
    %v195 = vunpack.c.l.b16 %v159
    %v196 = vunpack.c.l.b16 %v160
    %v197 = vunpack.c.l.b16 %v161
    %v198 = vunpack.c.l.b16 %v162
    %v199 = vunpack.c.l.b16 %v163
    %v200 = vunpack.c.l.b16 %v164
    %v201 = vunpack.c.l.b16 %v165
    %v202 = vunpack.c.l.b16 %v166
    %v203 = vpack.c.b16 %v188, %v187
    %v204 = vpack.c.b16 %v190, %v189
    %v205 = vpack.c.b16 %v192, %v191
    %v206 = vpack.c.b16 %v194, %v193
    %v207 = vpack.c.b16 %v196, %v195
    %v208 = vpack.c.b16 %v198, %v197
    %v209 = vpack.c.b16 %v200, %v199
    %v210 = vpack.c.b16 %v202, %v201
    %219 = vmatprep.subr.bf16.mxu0 0
    %220 = vmatpush1.bf16.msra.mxu0 %v203
    %221 = vmatprep.subr.bf16.mxu0 0
    %222 = vmatpush1.bf16.msra.mxu0 %v204
    %223 = vmatprep.subr.bf16.mxu0 0
    %224 = vmatpush1.bf16.msra.mxu0 %v205
    %225 = vmatprep.subr.bf16.mxu0 0
    %226 = vmatpush1.bf16.msra.mxu0 %v206
    %227 = vmatprep.subr.bf16.mxu0 0
    %228 = vmatpush1.bf16.msra.mxu0 %v207
    %229 = vmatprep.subr.bf16.mxu0 0
    %230 = vmatpush1.bf16.msra.mxu0 %v208
    %231 = vmatprep.subr.bf16.mxu0 0
    %232 = vmatpush1.bf16.msra.mxu0 %v209
    %233 = vmatprep.subr.bf16.mxu0 0
    %234 = vmatpush1.bf16.msra.mxu0 %v210
    %235 = vmatprep.subr.bf16.mxu0 0
    %236 = vmatpush1.bf16.msra.mxu0 0
    %237 = vmatprep.subr.bf16.mxu0 0
    %238 = vmatpush1.bf16.msra.mxu0 0
    %239 = vmatprep.subr.bf16.mxu0 0
    %240 = vmatpush1.bf16.msra.mxu0 0
    %241 = vmatprep.subr.bf16.mxu0 0
    %242 = vmatpush1.bf16.msra.mxu0 0
    %243 = vmatprep.subr.bf16.mxu0 0
    %244 = vmatpush1.bf16.msra.mxu0 0
    %245 = vmatprep.subr.bf16.mxu0 0
    %246 = vmatpush1.bf16.msra.mxu0 0
    %247 = vmatprep.subr.bf16.mxu0 0
    %248 = vmatpush1.bf16.msra.mxu0 0
    %249 = vmatprep.subr.bf16.mxu0 0
    %250 = vmatpush1.bf16.msra.mxu0 0
    %251 = vmatprep.mubr.bf16.mxu0 0
    %252 = vmatmul.mubr.bf16.gmra.mrb[0].mxu0 %v150
    %v253 = vpop.f32.mrb[0].mxu0
    %v254 = vadd.f32 %v170, %v253
    %v255 = vpop.f32.mrb[0].mxu0
    %v256 = vpop.f32.mrb[0].mxu0
    %v257 = vpop.f32.mrb[0].mxu0
    %258 = vdwg.mxu0
    %v259 = vmax.f32 %v254, 0.0
    %v260 = vpack.c.bf16 %v259, %v259
    %v261 = vld [vmem:[#allocation8] sm:$0xf]
    %v262 = vld [vmem:[#allocation8 + $0x4] sm:$0xf]
    %v263 = vld [vmem:[#allocation8 + $0x8] sm:$0xf]
    %v264 = vld [vmem:[#allocation8 + $0xc] sm:$0xf]
    %v265 = vld [vmem:[#allocation8 + $0x10] sm:$0xf]
    %v266 = vld [vmem:[#allocation8 + $0x14] sm:$0xf]
    %v267 = vld [vmem:[#allocation8 + $0x18] sm:$0xf]
    %v268 = vld [vmem:[#allocation8 + $0x1c] sm:$0xf]
    %v269 = vld [vmem:[#allocation8 + $0x20] sm:$0xf]
    %v270 = vld [vmem:[#allocation8 + $0x24] sm:$0xf]
    %v271 = vld [vmem:[#allocation8 + $0x28] sm:$0xf]
    %v272 = vld [vmem:[#allocation8 + $0x2c] sm:$0xf]
    %v273 = vld [vmem:[#allocation8 + $0x30] sm:$0xf]
    %v274 = vld [vmem:[#allocation8 + $0x34] sm:$0xf]
    %v275 = vld [vmem:[#allocation8 + $0x38] sm:$0xf]
    %v276 = vld [vmem:[#allocation8 + $0x3c] sm:$0xf]
    %v277 = vlaneseq
    %v278 = vshrl.u32 %v277, 7
    %v279 = vsub.s32 2, %v278
    %v280 = vrot.slane %v91, %v279
    %v297 = vunpack.c.l.b16 %v261
    %v298 = vunpack.c.l.b16 %v262
    %v299 = vunpack.c.l.b16 %v263
    %v300 = vunpack.c.l.b16 %v264
    %v301 = vunpack.c.l.b16 %v265
    %v302 = vunpack.c.l.b16 %v266
    %v303 = vunpack.c.l.b16 %v267
    %v304 = vunpack.c.l.b16 %v268
    %v305 = vunpack.c.l.b16 %v269
    %v306 = vunpack.c.l.b16 %v270
    %v307 = vunpack.c.l.b16 %v271
    %v308 = vunpack.c.l.b16 %v272
    %v309 = vunpack.c.l.b16 %v273
    %v310 = vunpack.c.l.b16 %v274
    %v311 = vunpack.c.l.b16 %v275
    %v312 = vunpack.c.l.b16 %v276
    %v313 = vpack.c.b16 %v298, %v297
    %v314 = vpack.c.b16 %v300, %v299
    %v315 = vpack.c.b16 %v302, %v301
    %v316 = vpack.c.b16 %v304, %v303
    %v317 = vpack.c.b16 %v306, %v305
    %v318 = vpack.c.b16 %v308, %v307
    %v319 = vpack.c.b16 %v310, %v309
    %v320 = vpack.c.b16 %v312, %v311
    %329 = vmatprep.subr.bf16.mxu0 0
    %330 = vmatpush1.bf16.msra.mxu0 %v313
    %331 = vmatprep.subr.bf16.mxu0 0
    %332 = vmatpush1.bf16.msra.mxu0 %v314
    %333 = vmatprep.subr.bf16.mxu0 0
    %334 = vmatpush1.bf16.msra.mxu0 %v315
    %335 = vmatprep.subr.bf16.mxu0 0
    %336 = vmatpush1.bf16.msra.mxu0 %v316
    %337 = vmatprep.subr.bf16.mxu0 0
    %338 = vmatpush1.bf16.msra.mxu0 %v317
    %339 = vmatprep.subr.bf16.mxu0 0
    %340 = vmatpush1.bf16.msra.mxu0 %v318
    %341 = vmatprep.subr.bf16.mxu0 0
    %342 = vmatpush1.bf16.msra.mxu0 %v319
    %343 = vmatprep.subr.bf16.mxu0 0
    %344 = vmatpush1.bf16.msra.mxu0 %v320
    %345 = vmatprep.subr.bf16.mxu0 0
    %346 = vmatpush1.bf16.msra.mxu0 0
    %347 = vmatprep.subr.bf16.mxu0 0
    %348 = vmatpush1.bf16.msra.mxu0 0
    %349 = vmatprep.subr.bf16.mxu0 0
    %350 = vmatpush1.bf16.msra.mxu0 0
    %351 = vmatprep.subr.bf16.mxu0 0
    %352 = vmatpush1.bf16.msra.mxu0 0
    %353 = vmatprep.subr.bf16.mxu0 0
    %354 = vmatpush1.bf16.msra.mxu0 0
    %355 = vmatprep.subr.bf16.mxu0 0
    %356 = vmatpush1.bf16.msra.mxu0 0
    %357 = vmatprep.subr.bf16.mxu0 0
    %358 = vmatpush1.bf16.msra.mxu0 0
    %359 = vmatprep.subr.bf16.mxu0 0
    %360 = vmatpush1.bf16.msra.mxu0 0
    %361 = vmatprep.mubr.bf16.mxu0 0
    %362 = vmatmul.mubr.bf16.gmra.mrb[0].mxu0 %v260
    %v363 = vpop.f32.mrb[0].mxu0
    %v364 = vadd.f32 %v280, %v363
    %v365 = vpop.f32.mrb[0].mxu0
    %v366 = vpop.f32.mrb[0].mxu0
    %v367 = vpop.f32.mrb[0].mxu0
    %368 = vdwg.mxu0
    %v369 = vmax.f32 %v364, 0.0
    %v370 = vpack.c.bf16 %v369, %v369
    %v371 = vld [vmem:[#allocation10] sm:$0xf]
    %v372 = vld [vmem:[#allocation10 + $0x4] sm:$0xf]
    %v373 = vld [vmem:[#allocation10 + $0x8] sm:$0xf]
    %v374 = vld [vmem:[#allocation10 + $0xc] sm:$0xf]
    %v375 = vld [vmem:[#allocation10 + $0x10] sm:$0xf]
    %v376 = vld [vmem:[#allocation10 + $0x14] sm:$0xf]
    %v377 = vld [vmem:[#allocation10 + $0x18] sm:$0xf]
    %v378 = vld [vmem:[#allocation10 + $0x1c] sm:$0xf]
    %v379 = vld [vmem:[#allocation10 + $0x20] sm:$0xf]
    %v380 = vld [vmem:[#allocation10 + $0x24] sm:$0xf]
    %v381 = vld [vmem:[#allocation10 + $0x28] sm:$0xf]
    %v382 = vld [vmem:[#allocation10 + $0x2c] sm:$0xf]
    %v383 = vld [vmem:[#allocation10 + $0x30] sm:$0xf]
    %v384 = vld [vmem:[#allocation10 + $0x34] sm:$0xf]
    %v385 = vld [vmem:[#allocation10 + $0x38] sm:$0xf]
    %v386 = vld [vmem:[#allocation10 + $0x3c] sm:$0xf]
    %v387 = vlaneseq
    %v388 = vshrl.u32 %v387, 7
    %v389 = vsub.s32 3, %v388
    %v390 = vrot.slane %v91, %v389
    %v407 = vunpack.c.l.b16 %v371
    %v408 = vunpack.c.l.b16 %v372
    %v409 = vunpack.c.l.b16 %v373
    %v410 = vunpack.c.l.b16 %v374
    %v411 = vunpack.c.l.b16 %v375
    %v412 = vunpack.c.l.b16 %v376
    %v413 = vunpack.c.l.b16 %v377
    %v414 = vunpack.c.l.b16 %v378
    %v415 = vunpack.c.l.b16 %v379
    %v416 = vunpack.c.l.b16 %v380
    %v417 = vunpack.c.l.b16 %v381
    %v418 = vunpack.c.l.b16 %v382
    %v419 = vunpack.c.l.b16 %v383
    %v420 = vunpack.c.l.b16 %v384
    %v421 = vunpack.c.l.b16 %v385
    %v422 = vunpack.c.l.b16 %v386
    %v423 = vpack.c.b16 %v408, %v407
    %v424 = vpack.c.b16 %v410, %v409
    %v425 = vpack.c.b16 %v412, %v411
    %v426 = vpack.c.b16 %v414, %v413
    %v427 = vpack.c.b16 %v416, %v415
    %v428 = vpack.c.b16 %v418, %v417
    %v429 = vpack.c.b16 %v420, %v419
    %v430 = vpack.c.b16 %v422, %v421
    %439 = vmatprep.subr.bf16.mxu0 0
    %440 = vmatpush1.bf16.msra.mxu0 %v423
    %441 = vmatprep.subr.bf16.mxu0 0
    %442 = vmatpush1.bf16.msra.mxu0 %v424
    %443 = vmatprep.subr.bf16.mxu0 0
    %444 = vmatpush1.bf16.msra.mxu0 %v425
    %445 = vmatprep.subr.bf16.mxu0 0
    %446 = vmatpush1.bf16.msra.mxu0 %v426
    %447 = vmatprep.subr.bf16.mxu0 0
    %448 = vmatpush1.bf16.msra.mxu0 %v427
    %449 = vmatprep.subr.bf16.mxu0 0
    %450 = vmatpush1.bf16.msra.mxu0 %v428
    %451 = vmatprep.subr.bf16.mxu0 0
    %452 = vmatpush1.bf16.msra.mxu0 %v429
    %453 = vmatprep.subr.bf16.mxu0 0
    %454 = vmatpush1.bf16.msra.mxu0 %v430
    %455 = vmatprep.subr.bf16.mxu0 0
    %456 = vmatpush1.bf16.msra.mxu0 0
    %457 = vmatprep.subr.bf16.mxu0 0
    %458 = vmatpush1.bf16.msra.mxu0 0
    %459 = vmatprep.subr.bf16.mxu0 0
    %460 = vmatpush1.bf16.msra.mxu0 0
    %461 = vmatprep.subr.bf16.mxu0 0
    %462 = vmatpush1.bf16.msra.mxu0 0
    %463 = vmatprep.subr.bf16.mxu0 0
    %464 = vmatpush1.bf16.msra.mxu0 0
    %465 = vmatprep.subr.bf16.mxu0 0
    %466 = vmatpush1.bf16.msra.mxu0 0
    %467 = vmatprep.subr.bf16.mxu0 0
    %468 = vmatpush1.bf16.msra.mxu0 0
    %469 = vmatprep.subr.bf16.mxu0 0
    %470 = vmatpush1.bf16.msra.mxu0 0
    %471 = vmatprep.mubr.bf16.mxu0 0
    %472 = vmatmul.mubr.bf16.gmra.mrb[0].mxu0 %v370
    %v473 = vpop.f32.mrb[0].mxu0
    %v474 = vadd.f32 %v390, %v473
    %v475 = vpop.f32.mrb[0].mxu0
    %v476 = vpop.f32.mrb[0].mxu0
    %v477 = vpop.f32.mrb[0].mxu0
    %478 = vdwg.mxu0
    %v479 = vmax.f32 %v474, 0.0
    %480 = vst [vmem:[#allocation11] sm:$0xff] %v479
    // Predicated region
    $region46: #{tpu_custom_call.1} parent=1 // pred_check
      _
    $region47: #{tpu_custom_call.1} parent=1 // pred_check_branch
      %482 = sbr.rel (0) target = $region49
    $region48: #{tpu_custom_call.1} parent=1 // pred_region
      %s484 = ssub.s32 128, 128
      %485 = vsyncadd [#allocation4], %s484
      %s487 = sshll.u32 [#allocation11], 4
      %s488 = int_to_ptr.vmem [resolvable:$true] %s487
      %490 = dma.vmem_to_hbm [thread:$0]  %s488, 128, %s6, [#allocation4]
    $region49: #{tpu_custom_call.1} parent=1 // pred_fallthru
      _
    // Predicated region
    $region50: #{tpu_custom_call.1} parent=1 // pred_check
      _
    $region51: #{tpu_custom_call.1} parent=1 // pred_check_branch
      %492 = sbr.rel (0) target = $region53
    $region52: #{tpu_custom_call.1} parent=1 // pred_region
      %493 = dma.done [#allocation4], 128
    $region53: #{tpu_custom_call.1} parent=1 // pred_fallthru
      _
    %494 = vsyncpa [#allocation3], 1
    %495 = vsyncpa [#allocation6], 1
    %496 = vsyncpa [#allocation9], 1
    %497 = vsyncpa [#allocation4], 1

// kernel: tpu_custom_call.1
$region0: #{tpu_custom_call.1}
  #allocation0 [shape = 'u32[]', space=smem, size = 0x4, offset = 0x4, fixed_abs, tag = 'smem constant byte address 0x4 - core index']
  #allocation1 [shape = 'u32[144,128]{1,0:T(1,128)}', space=vmem, size = 0x12000, scoped, tag = 'internal scratch']
  %s0 = inlined_call_operand.hbm [shape: bf16[8,16], index: 0, kind: input, shape index: {}]
  %s1 = inlined_call_operand.hbm [shape: bf16[16,128], index: 1, kind: input, shape index: {}]
  %s2 = inlined_call_operand.hbm [shape: bf16[128,128], index: 2, kind: input, shape index: {}]
  %s3 = inlined_call_operand.hbm [shape: bf16[128,128], index: 3, kind: input, shape index: {}]
  %s4 = inlined_call_operand.hbm [shape: bf16[128,128], index: 4, kind: input, shape index: {}]
  %s5 = inlined_call_operand.vmem [shape: f32[4,128], index: 5, kind: input, shape index: {}]
  %s6 = inlined_call_operand.hbm [shape: f32[8,128], index: 6, kind: output, shape index: {}]
  %s7 = sld [smem:[#allocation0]]
  $region54: #{tpu_custom_call.1} parent=0
    _
  %s9 = ssub.s32 1, %s7
  %s10 = scalar_select 0, %s9, %s7
  $region1: #{tpu_custom_call.1} parent=0
    #allocation2 [shape = 'u8[2048]{0}', space=vmem, size = 0x800, scoped, tag = 'input window, operand 0, single buffered']
    #allocation3 [shape = 's32[1]{0}', space=sflag, size = 0x4, scoped, tag = 'scoped memory for tpu_custom_call.1']
    #allocation4 [shape = 's32[1]{0}', space=sflag, size = 0x4, scoped, tag = 'scoped memory for tpu_custom_call.1']
    #allocation5 [shape = 'u8[4096]{0}', space=vmem, size = 0x1000, scoped, tag = 'input window, operand 1, single buffered']
    #allocation6 [shape = 's32[1]{0}', space=sflag, size = 0x4, scoped, tag = 'scoped memory for tpu_custom_call.1']
    #allocation7 [shape = 'u8[32768]{0}', space=vmem, size = 0x8000, scoped, tag = 'input window, operand 2, single buffered']
    #allocation8 [shape = 'u8[32768]{0}', space=vmem, size = 0x8000, scoped, tag = 'input window, operand 3, single buffered']
    #allocation9 [shape = 's32[1]{0}', space=sflag, size = 0x4, scoped, tag = 'scoped memory for tpu_custom_call.1']
    #allocation10 [shape = 'u8[32768]{0}', space=vmem, size = 0x8000, scoped, tag = 'input window, operand 4, single buffered']
    #allocation11 [shape = 'u8[4096]{0}', space=vmem, size = 0x1000, scoped, tag = 'output window, operand 0, single buffered']
    %11 = vsyncpa [#allocation3], 0
    %12 = vsyncpa [#allocation6], 0
    %13 = vsyncpa [#allocation9], 0
    %14 = vsyncpa [#allocation4], 0
    // Predicated region
    $region2: #{tpu_custom_call.1} parent=1 // pred_check
      _
    $region3: #{tpu_custom_call.1} parent=1 // pred_check_branch
      %16 = sbr.rel (0) target = $region5
    $region4: #{tpu_custom_call.1} parent=1 // pred_region
      %s18 = ssub.s32 64, 64
      %19 = vsyncadd [#allocation3], %s18
      %s21 = sshll.u32 [#allocation2], 4
      %s22 = int_to_ptr.vmem [resolvable:$true] %s21
      %24 = dma.hbm_to_vmem [thread:$0]  %s0, 64, %s22, [#allocation3]
    $region5: #{tpu_custom_call.1} parent=1 // pred_fallthru
      _
    // Predicated region
    $region6: #{tpu_custom_call.1} parent=1 // pred_check
      _
    $region7: #{tpu_custom_call.1} parent=1 // pred_check_branch
      %26 = sbr.rel (0) target = $region9
    $region8: #{tpu_custom_call.1} parent=1 // pred_region
      %s28 = ssub.s32 128, 128
      %29 = vsyncadd [#allocation6], %s28
      %s30 = sshll.u32 [#allocation5], 4
      %s31 = int_to_ptr.vmem [resolvable:$true] %s30
      %36 = dma.hbm_to_vmem [thread:$0]  %s1, 128, %s31, [#allocation6], 64, 64, 4
    $region9: #{tpu_custom_call.1} parent=1 // pred_fallthru
      _
    // Predicated region
    $region10: #{tpu_custom_call.1} parent=1 // pred_check
      _
    $region11: #{tpu_custom_call.1} parent=1 // pred_check_branch
      %38 = sbr.rel (0) target = $region13
    $region12: #{tpu_custom_call.1} parent=1 // pred_region
      %s40 = ssub.s32 1024, 1024
      %41 = vsyncadd [#allocation6], %s40
      %s42 = sshll.u32 [#allocation7], 4
      %s43 = int_to_ptr.vmem [resolvable:$true] %s42
      %48 = dma.hbm_to_vmem [thread:$0]  %s2, 1024, %s43, [#allocation6], 64, 64, 4
    $region13: #{tpu_custom_call.1} parent=1 // pred_fallthru
      _
    // Predicated region
    $region14: #{tpu_custom_call.1} parent=1 // pred_check
      _
    $region15: #{tpu_custom_call.1} parent=1 // pred_check_branch
      %50 = sbr.rel (0) target = $region17
    $region16: #{tpu_custom_call.1} parent=1 // pred_region
      %s52 = ssub.s32 1024, 1024
      %53 = vsyncadd [#allocation9], %s52
      %s54 = sshll.u32 [#allocation8], 4
      %s55 = int_to_ptr.vmem [resolvable:$true] %s54
      %60 = dma.hbm_to_vmem [thread:$0]  %s3, 1024, %s55, [#allocation9], 64, 64, 4
    $region17: #{tpu_custom_call.1} parent=1 // pred_fallthru
      _
    // Predicated region
    $region18: #{tpu_custom_call.1} parent=1 // pred_check
      _
    $region19: #{tpu_custom_call.1} parent=1 // pred_check_branch
      %62 = sbr.rel (0) target = $region21
    $region20: #{tpu_custom_call.1} parent=1 // pred_region
      %s64 = ssub.s32 1024, 1024
      %65 = vsyncadd [#allocation9], %s64
      %s66 = sshll.u32 [#allocation10], 4
      %s67 = int_to_ptr.vmem [resolvable:$true] %s66
      %72 = dma.hbm_to_vmem [thread:$0]  %s4, 1024, %s67, [#allocation9], 64, 64, 4
    $region21: #{tpu_custom_call.1} parent=1 // pred_fallthru
      _
    // Predicated region
    $region22: #{tpu_custom_call.1} parent=1 // pred_check
      _
    $region23: #{tpu_custom_call.1} parent=1 // pred_check_branch
      %74 = sbr.rel (0) target = $region25
    $region24: #{tpu_custom_call.1} parent=1 // pred_region
      _
    $region25: #{tpu_custom_call.1} parent=1 // pred_fallthru
      _
    // Predicated region
    $region26: #{tpu_custom_call.1} parent=1 // pred_check
      _
    $region27: #{tpu_custom_call.1} parent=1 // pred_check_branch
      %76 = sbr.rel (0) target = $region29
    $region28: #{tpu_custom_call.1} parent=1 // pred_region
      %77 = dma.done [#allocation3], 64
    $region29: #{tpu_custom_call.1} parent=1 // pred_fallthru
      _
    // Predicated region
    $region30: #{tpu_custom_call.1} parent=1 // pred_check
      _
    $region31: #{tpu_custom_call.1} parent=1 // pred_check_branch
      %79 = sbr.rel (0) target = $region33
    $region32: #{tpu_custom_call.1} parent=1 // pred_region
      %80 = dma.done [#allocation6], 128
    $region33: #{tpu_custom_call.1} parent=1 // pred_fallthru
      _
    // Predicated region
    $region34: #{tpu_custom_call.1} parent=1 // pred_check
      _
    $region35: #{tpu_custom_call.1} parent=1 // pred_check_branch
      %82 = sbr.rel (0) target = $region37
    $region36: #{tpu_custom_call.1} parent=1 // pred_region
      %83 = dma.done [#allocation6], 1024
    $region37: #{tpu_custom_call.1} parent=1 // pred_fallthru
      _
    // Predicated region
    $region38: #{tpu_custom_call.1} parent=1 // pred_check
      _
    $region39: #{tpu_custom_call.1} parent=1 // pred_check_branch
      %85 = sbr.rel (0) target = $region41
    $region40: #{tpu_custom_call.1} parent=1 // pred_region
      %86 = dma.done [#allocation9], 1024
    $region41: #{tpu_custom_call.1} parent=1 // pred_fallthru
      _
    // Predicated region
    $region42: #{tpu_custom_call.1} parent=1 // pred_check
      _
    $region43: #{tpu_custom_call.1} parent=1 // pred_check_branch
      %88 = sbr.rel (0) target = $region45
    $region44: #{tpu_custom_call.1} parent=1 // pred_region
      %89 = dma.done [#allocation9], 1024
    $region45: #{tpu_custom_call.1} parent=1 // pred_fallthru
      _
    %v91 = vld [vmem:[%s5] sm:$0xf]
    %v92 = vld [vmem:[#allocation2] sm:$0xf]
    %v93 = vld [vmem:[#allocation5] sm:$0xf]
    %v94 = vld [vmem:[#allocation5 + $0x4] sm:$0xf]
    %v95 = vlaneseq
    %v96 = vshrl.u32 %v95, 7
    %v97 = vsub.s32 0, %v96
    %v98 = vrot.slane %v91, %v97
    %v101 = vunpack.c.l.b16 %v93
    %v102 = vunpack.c.l.b16 %v94
    %v103 = vpack.c.b16 %v102, %v101
    %vm105 = vcmask 130048
    %v107 = vsel %vm105, %v92, 0
    %109 = vmatprep.subr.bf16.mxu0 0
    %110 = vmatpush1.bf16.msra.mxu0 %v103
    %111 = vmatprep.subr.bf16.mxu0 0
    %112 = vmatpush1.bf16.msra.mxu0 0
    %113 = vmatprep.subr.bf16.mxu0 0
    %114 = vmatpush1.bf16.msra.mxu0 0
    %115 = vmatprep.subr.bf16.mxu0 0
    %116 = vmatpush1.bf16.msra.mxu0 0
    %117 = vmatprep.subr.bf16.mxu0 0
    %118 = vmatpush1.bf16.msra.mxu0 0
    %119 = vmatprep.subr.bf16.mxu0 0
    %120 = vmatpush1.bf16.msra.mxu0 0
    %121 = vmatprep.subr.bf16.mxu0 0
    %122 = vmatpush1.bf16.msra.mxu0 0
    %123 = vmatprep.subr.bf16.mxu0 0
    %124 = vmatpush1.bf16.msra.mxu0 0
    %125 = vmatprep.subr.bf16.mxu0 0
    %126 = vmatpush1.bf16.msra.mxu0 0
    %127 = vmatprep.subr.bf16.mxu0 0
    %128 = vmatpush1.bf16.msra.mxu0 0
    %129 = vmatprep.subr.bf16.mxu0 0
    %130 = vmatpush1.bf16.msra.mxu0 0
    %131 = vmatprep.subr.bf16.mxu0 0
    %132 = vmatpush1.bf16.msra.mxu0 0
    %133 = vmatprep.subr.bf16.mxu0 0
    %134 = vmatpush1.bf16.msra.mxu0 0
    %135 = vmatprep.subr.bf16.mxu0 0
    %136 = vmatpush1.bf16.msra.mxu0 0
    %137 = vmatprep.subr.bf16.mxu0 0
    %138 = vmatpush1.bf16.msra.mxu0 0
    %139 = vmatprep.subr.bf16.mxu0 0
    %140 = vmatpush1.bf16.msra.mxu0 0
    %141 = vmatprep.mubr.bf16.mxu0 0
    %142 = vmatmul.mubr.bf16.gmra.mrb[0].mxu0 %v107
    %v143 = vpop.f32.mrb[0].mxu0
    %v144 = vadd.f32 %v98, %v143
    %v145 = vpop.f32.mrb[0].mxu0
    %v146 = vpop.f32.mrb[0].mxu0
    %v147 = vpop.f32.mrb[0].mxu0
    %148 = vdwg.mxu0
    %v149 = vmax.f32 %v144, 0.0
    %v150 = vpack.c.bf16 %v149, %v149
    %v151 = vld [vmem:[#allocation7] sm:$0xf]
    %v152 = vld [vmem:[#allocation7 + $0x4] sm:$0xf]
    %v153 = vld [vmem:[#allocation7 + $0x8] sm:$0xf]
    %v154 = vld [vmem:[#allocation7 + $0xc] sm:$0xf]
    %v155 = vld [vmem:[#allocation7 + $0x10] sm:$0xf]
    %v156 = vld [vmem:[#allocation7 + $0x14] sm:$0xf]
    %v157 = vld [vmem:[#allocation7 + $0x18] sm:$0xf]
    %v158 = vld [vmem:[#allocation7 + $0x1c] sm:$0xf]
    %v159 = vld [vmem:[#allocation7 + $0x20] sm:$0xf]
    %v160 = vld [vmem:[#allocation7 + $0x24] sm:$0xf]
    %v161 = vld [vmem:[#allocation7 + $0x28] sm:$0xf]
    %v162 = vld [vmem:[#allocation7 + $0x2c] sm:$0xf]
    %v163 = vld [vmem:[#allocation7 + $0x30] sm:$0xf]
    %v164 = vld [vmem:[#allocation7 + $0x34] sm:$0xf]
    %v165 = vld [vmem:[#allocation7 + $0x38] sm:$0xf]
    %v166 = vld [vmem:[#allocation7 + $0x3c] sm:$0xf]
    %v167 = vlaneseq
    %v168 = vshrl.u32 %v167, 7
    %v169 = vsub.s32 1, %v168
    %v170 = vrot.slane %v91, %v169
    %v187 = vunpack.c.l.b16 %v151
    %v188 = vunpack.c.l.b16 %v152
    %v189 = vunpack.c.l.b16 %v153
    %v190 = vunpack.c.l.b16 %v154
    %v191 = vunpack.c.l.b16 %v155
    %v192 = vunpack.c.l.b16 %v156
    %v193 = vunpack.c.l.b16 %v157
    %v194 = vunpack.c.l.b16 %v158
    %v195 = vunpack.c.l.b16 %v159
    %v196 = vunpack.c.l.b16 %v160
    %v197 = vunpack.c.l.b16 %v161
    %v198 = vunpack.c.l.b16 %v162
    %v199 = vunpack.c.l.b16 %v163
    %v200 = vunpack.c.l.b16 %v164
    %v201 = vunpack.c.l.b16 %v165
    %v202 = vunpack.c.l.b16 %v166
    %v203 = vpack.c.b16 %v188, %v187
    %v204 = vpack.c.b16 %v190, %v189
    %v205 = vpack.c.b16 %v192, %v191
    %v206 = vpack.c.b16 %v194, %v193
    %v207 = vpack.c.b16 %v196, %v195
    %v208 = vpack.c.b16 %v198, %v197
    %v209 = vpack.c.b16 %v200, %v199
    %v210 = vpack.c.b16 %v202, %v201
    %219 = vmatprep.subr.bf16.mxu0 0
    %220 = vmatpush1.bf16.msra.mxu0 %v203
    %221 = vmatprep.subr.bf16.mxu0 0
    %222 = vmatpush1.bf16.msra.mxu0 %v204
    %223 = vmatprep.subr.bf16.mxu0 0
    %224 = vmatpush1.bf16.msra.mxu0 %v205
    %225 = vmatprep.subr.bf16.mxu0 0
    %226 = vmatpush1.bf16.msra.mxu0 %v206
    %227 = vmatprep.subr.bf16.mxu0 0
    %228 = vmatpush1.bf16.msra.mxu0 %v207
    %229 = vmatprep.subr.bf16.mxu0 0
    %230 = vmatpush1.bf16.msra.mxu0 %v208
    %231 = vmatprep.subr.bf16.mxu0 0
    %232 = vmatpush1.bf16.msra.mxu0 %v209
    %233 = vmatprep.subr.bf16.mxu0 0
    %234 = vmatpush1.bf16.msra.mxu0 %v210
    %235 = vmatprep.subr.bf16.mxu0 0
    %236 = vmatpush1.bf16.msra.mxu0 0
    %237 = vmatprep.subr.bf16.mxu0 0
    %238 = vmatpush1.bf16.msra.mxu0 0
    %239 = vmatprep.subr.bf16.mxu0 0
    %240 = vmatpush1.bf16.msra.mxu0 0
    %241 = vmatprep.subr.bf16.mxu0 0
    %242 = vmatpush1.bf16.msra.mxu0 0
    %243 = vmatprep.subr.bf16.mxu0 0
    %244 = vmatpush1.bf16.msra.mxu0 0
    %245 = vmatprep.subr.bf16.mxu0 0
    %246 = vmatpush1.bf16.msra.mxu0 0
    %247 = vmatprep.subr.bf16.mxu0 0
    %248 = vmatpush1.bf16.msra.mxu0 0
    %249 = vmatprep.subr.bf16.mxu0 0
    %250 = vmatpush1.bf16.msra.mxu0 0
    %251 = vmatprep.mubr.bf16.mxu0 0
    %252 = vmatmul.mubr.bf16.gmra.mrb[0].mxu0 %v150
    %v253 = vpop.f32.mrb[0].mxu0
    %v254 = vadd.f32 %v170, %v253
    %v255 = vpop.f32.mrb[0].mxu0
    %v256 = vpop.f32.mrb[0].mxu0
    %v257 = vpop.f32.mrb[0].mxu0
    %258 = vdwg.mxu0
    %v259 = vmax.f32 %v254, 0.0
    %v260 = vpack.c.bf16 %v259, %v259
    %v261 = vld [vmem:[#allocation8] sm:$0xf]
    %v262 = vld [vmem:[#allocation8 + $0x4] sm:$0xf]
    %v263 = vld [vmem:[#allocation8 + $0x8] sm:$0xf]
    %v264 = vld [vmem:[#allocation8 + $0xc] sm:$0xf]
    %v265 = vld [vmem:[#allocation8 + $0x10] sm:$0xf]
    %v266 = vld [vmem:[#allocation8 + $0x14] sm:$0xf]
    %v267 = vld [vmem:[#allocation8 + $0x18] sm:$0xf]
    %v268 = vld [vmem:[#allocation8 + $0x1c] sm:$0xf]
    %v269 = vld [vmem:[#allocation8 + $0x20] sm:$0xf]
    %v270 = vld [vmem:[#allocation8 + $0x24] sm:$0xf]
    %v271 = vld [vmem:[#allocation8 + $0x28] sm:$0xf]
    %v272 = vld [vmem:[#allocation8 + $0x2c] sm:$0xf]
    %v273 = vld [vmem:[#allocation8 + $0x30] sm:$0xf]
    %v274 = vld [vmem:[#allocation8 + $0x34] sm:$0xf]
    %v275 = vld [vmem:[#allocation8 + $0x38] sm:$0xf]
    %v276 = vld [vmem:[#allocation8 + $0x3c] sm:$0xf]
    %v277 = vlaneseq
    %v278 = vshrl.u32 %v277, 7
    %v279 = vsub.s32 2, %v278
    %v280 = vrot.slane %v91, %v279
    %v297 = vunpack.c.l.b16 %v261
    %v298 = vunpack.c.l.b16 %v262
    %v299 = vunpack.c.l.b16 %v263
    %v300 = vunpack.c.l.b16 %v264
    %v301 = vunpack.c.l.b16 %v265
    %v302 = vunpack.c.l.b16 %v266
    %v303 = vunpack.c.l.b16 %v267
    %v304 = vunpack.c.l.b16 %v268
    %v305 = vunpack.c.l.b16 %v269
    %v306 = vunpack.c.l.b16 %v270
    %v307 = vunpack.c.l.b16 %v271
    %v308 = vunpack.c.l.b16 %v272
    %v309 = vunpack.c.l.b16 %v273
    %v310 = vunpack.c.l.b16 %v274
    %v311 = vunpack.c.l.b16 %v275
    %v312 = vunpack.c.l.b16 %v276
    %v313 = vpack.c.b16 %v298, %v297
    %v314 = vpack.c.b16 %v300, %v299
    %v315 = vpack.c.b16 %v302, %v301
    %v316 = vpack.c.b16 %v304, %v303
    %v317 = vpack.c.b16 %v306, %v305
    %v318 = vpack.c.b16 %v308, %v307
    %v319 = vpack.c.b16 %v310, %v309
    %v320 = vpack.c.b16 %v312, %v311
    %329 = vmatprep.subr.bf16.mxu0 0
    %330 = vmatpush1.bf16.msra.mxu0 %v313
    %331 = vmatprep.subr.bf16.mxu0 0
    %332 = vmatpush1.bf16.msra.mxu0 %v314
    %333 = vmatprep.subr.bf16.mxu0 0
    %334 = vmatpush1.bf16.msra.mxu0 %v315
    %335 = vmatprep.subr.bf16.mxu0 0
    %336 = vmatpush1.bf16.msra.mxu0 %v316
    %337 = vmatprep.subr.bf16.mxu0 0
    %338 = vmatpush1.bf16.msra.mxu0 %v317
    %339 = vmatprep.subr.bf16.mxu0 0
    %340 = vmatpush1.bf16.msra.mxu0 %v318
    %341 = vmatprep.subr.bf16.mxu0 0
    %342 = vmatpush1.bf16.msra.mxu0 %v319
    %343 = vmatprep.subr.bf16.mxu0 0
    %344 = vmatpush1.bf16.msra.mxu0 %v320
    %345 = vmatprep.subr.bf16.mxu0 0
    %346 = vmatpush1.bf16.msra.mxu0 0
    %347 = vmatprep.subr.bf16.mxu0 0
    %348 = vmatpush1.bf16.msra.mxu0 0
    %349 = vmatprep.subr.bf16.mxu0 0
    %350 = vmatpush1.bf16.msra.mxu0 0
    %351 = vmatprep.subr.bf16.mxu0 0
    %352 = vmatpush1.bf16.msra.mxu0 0
    %353 = vmatprep.subr.bf16.mxu0 0
    %354 = vmatpush1.bf16.msra.mxu0 0
    %355 = vmatprep.subr.bf16.mxu0 0
    %356 = vmatpush1.bf16.msra.mxu0 0
    %357 = vmatprep.subr.bf16.mxu0 0
    %358 = vmatpush1.bf16.msra.mxu0 0
    %359 = vmatprep.subr.bf16.mxu0 0
    %360 = vmatpush1.bf16.msra.mxu0 0
    %361 = vmatprep.mubr.bf16.mxu0 0
    %362 = vmatmul.mubr.bf16.gmra.mrb[0].mxu0 %v260
    %v363 = vpop.f32.mrb[0].mxu0
    %v364 = vadd.f32 %v280, %v363
    %v365 = vpop.f32.mrb[0].mxu0
    %v366 = vpop.f32.mrb[0].mxu0
    %v367 = vpop.f32.mrb[0].mxu0
    %368 = vdwg.mxu0
    %v369 = vmax.f32 %v364, 0.0
    %v370 = vpack.c.bf16 %v369, %v369
    %v371 = vld [vmem:[#allocation10] sm:$0xf]
    %v372 = vld [vmem:[#allocation10 + $0x4] sm:$0xf]
    %v373 = vld [vmem:[#allocation10 + $0x8] sm:$0xf]
    %v374 = vld [vmem:[#allocation10 + $0xc] sm:$0xf]
    %v375 = vld [vmem:[#allocation10 + $0x10] sm:$0xf]
    %v376 = vld [vmem:[#allocation10 + $0x14] sm:$0xf]
    %v377 = vld [vmem:[#allocation10 + $0x18] sm:$0xf]
    %v378 = vld [vmem:[#allocation10 + $0x1c] sm:$0xf]
    %v379 = vld [vmem:[#allocation10 + $0x20] sm:$0xf]
    %v380 = vld [vmem:[#allocation10 + $0x24] sm:$0xf]
    %v381 = vld [vmem:[#allocation10 + $0x28] sm:$0xf]
    %v382 = vld [vmem:[#allocation10 + $0x2c] sm:$0xf]
    %v383 = vld [vmem:[#allocation10 + $0x30] sm:$0xf]
    %v384 = vld [vmem:[#allocation10 + $0x34] sm:$0xf]
    %v385 = vld [vmem:[#allocation10 + $0x38] sm:$0xf]
    %v386 = vld [vmem:[#allocation10 + $0x3c] sm:$0xf]
    %v387 = vlaneseq
    %v388 = vshrl.u32 %v387, 7
    %v389 = vsub.s32 3, %v388
    %v390 = vrot.slane %v91, %v389
    %v407 = vunpack.c.l.b16 %v371
    %v408 = vunpack.c.l.b16 %v372
    %v409 = vunpack.c.l.b16 %v373
    %v410 = vunpack.c.l.b16 %v374
    %v411 = vunpack.c.l.b16 %v375
    %v412 = vunpack.c.l.b16 %v376
    %v413 = vunpack.c.l.b16 %v377
    %v414 = vunpack.c.l.b16 %v378
    %v415 = vunpack.c.l.b16 %v379
    %v416 = vunpack.c.l.b16 %v380
    %v417 = vunpack.c.l.b16 %v381
    %v418 = vunpack.c.l.b16 %v382
    %v419 = vunpack.c.l.b16 %v383
    %v420 = vunpack.c.l.b16 %v384
    %v421 = vunpack.c.l.b16 %v385
    %v422 = vunpack.c.l.b16 %v386
    %v423 = vpack.c.b16 %v408, %v407
    %v424 = vpack.c.b16 %v410, %v409
    %v425 = vpack.c.b16 %v412, %v411
    %v426 = vpack.c.b16 %v414, %v413
    %v427 = vpack.c.b16 %v416, %v415
    %v428 = vpack.c.b16 %v418, %v417
    %v429 = vpack.c.b16 %v420, %v419
    %v430 = vpack.c.b16 %v422, %v421
    %439 = vmatprep.subr.bf16.mxu0 0
    %440 = vmatpush1.bf16.msra.mxu0 %v423
    %441 = vmatprep.subr.bf16.mxu0 0
    %442 = vmatpush1.bf16.msra.mxu0 %v424
    %443 = vmatprep.subr.bf16.mxu0 0
    %444 = vmatpush1.bf16.msra.mxu0 %v425
    %445 = vmatprep.subr.bf16.mxu0 0
    %446 = vmatpush1.bf16.msra.mxu0 %v426
    %447 = vmatprep.subr.bf16.mxu0 0
    %448 = vmatpush1.bf16.msra.mxu0 %v427
    %449 = vmatprep.subr.bf16.mxu0 0
    %450 = vmatpush1.bf16.msra.mxu0 %v428
    %451 = vmatprep.subr.bf16.mxu0 0
    %452 = vmatpush1.bf16.msra.mxu0 %v429
    %453 = vmatprep.subr.bf16.mxu0 0
    %454 = vmatpush1.bf16.msra.mxu0 %v430
    %455 = vmatprep.subr.bf16.mxu0 0
    %456 = vmatpush1.bf16.msra.mxu0 0
    %457 = vmatprep.subr.bf16.mxu0 0
    %458 = vmatpush1.bf16.msra.mxu0 0
    %459 = vmatprep.subr.bf16.mxu0 0
    %460 = vmatpush1.bf16.msra.mxu0 0
    %461 = vmatprep.subr.bf16.mxu0 0
    %462 = vmatpush1.bf16.msra.mxu0 0
    %463 = vmatprep.subr.bf16.mxu0 0
    %464 = vmatpush1.bf16.msra.mxu0 0
    %465 = vmatprep.subr.bf16.mxu0 0
    %466 = vmatpush1.bf16.msra.mxu0 0
    %467 = vmatprep.subr.bf16.mxu0 0
    %468 = vmatpush1.bf16.msra.mxu0 0
    %469 = vmatprep.subr.bf16.mxu0 0
    %470 = vmatpush1.bf16.msra.mxu0 0
    %471 = vmatprep.mubr.bf16.mxu0 0
    %472 = vmatmul.mubr.bf16.gmra.mrb[0].mxu0 %v370
    %v473 = vpop.f32.mrb[0].mxu0
    %v474 = vadd.f32 %v390, %v473
    %v475 = vpop.f32.mrb[0].mxu0
    %v476 = vpop.f32.mrb[0].mxu0
    %v477 = vpop.f32.mrb[0].mxu0
    %478 = vdwg.mxu0
    %v479 = vmax.f32 %v474, 0.0
    %480 = vst [vmem:[#allocation11] sm:$0xff] %v479
    // Predicated region
    $region46: #{tpu_custom_call.1} parent=1 // pred_check
      _
    $region47: #{tpu_custom_call.1} parent=1 // pred_check_branch
      %482 = sbr.rel (0) target = $region49
    $region48: #{tpu_custom_call.1} parent=1 // pred_region
      %s484 = ssub.s32 128, 128
      %485 = vsyncadd [#allocation4], %s484
      %s487 = sshll.u32 [#allocation11], 4
      %s488 = int_to_ptr.vmem [resolvable:$true] %s487
      %490 = dma.vmem_to_hbm [thread:$0]  %s488, 128, %s6, [#allocation4]
    $region49: #{tpu_custom_call.1} parent=1 // pred_fallthru
      _
    // Predicated region
    $region50: #{tpu_custom_call.1} parent=1 // pred_check
      _
    $region51: #{tpu_custom_call.1} parent=1 // pred_check_branch
      %492 = sbr.rel (0) target = $region53
    $region52: #{tpu_custom_call.1} parent=1 // pred_region
      %493 = dma.done [#allocation4], 128
    $region53: #{tpu_custom_call.1} parent=1 // pred_fallthru
      _
    %494 = vsyncpa [#allocation3], 1
    %495 = vsyncpa [#allocation6], 1
    %496 = vsyncpa [#allocation9], 1
    %497 = vsyncpa [#allocation4], 1

</llo_original>
